<compile_context>
chip_gen: v7x
topology: tpu7x:2x2x1
jax: 0.10.0
libtpu: 0.0.40
codegen_flags: <defaults>
</compile_context>

<pallas_src>
import jax
import jax.numpy as jnp
from jax.experimental import pallas as pl
from jax.experimental.pallas import tpu as pltpu

REDUCTION_DIM = 128   # stands in for cfg.MODEL.HEADS.REDUCTION_DIM
BN_EPS = 1e-5
L2_EPS = 1e-12        # F.normalize default eps


def _pick_hw_tile(hw, batch, c, target_bytes=2 << 20):
    """Spatial chunk (rows of the (B, HW, C) map) giving ~target_bytes blocks."""
    if hw % 8 != 0:
        return hw                      # full extent is always a legal block dim
    row_bytes = batch * c * 4
    t = min(hw, max(8, (target_bytes // row_bytes) // 8 * 8))
    while hw % t:
        t -= 8
    return t


def _make_fused_kernel(batch, hw_total):
    inv_hw = 1.0 / float(hw_total)

    def kernel(fg_ref, v_ref, wg_ref, wo_ref, b_ref, o_ref, acc_ref):
        # fg_ref : (B, C)        grid-invariant global descriptor
        # v_ref  : (B, hw_t, C)  channel-last spatial chunk of vlad
        # wg_ref : (C, C)        BN-folded fc weight for the fg half
        # wo_ref : (C, C)        BN-folded fc weight for the fo half
        # b_ref  : (1, C)        BN-folded bias
        # o_ref  : (B, C)        resident output (written at the last step)
        # acc_ref: (B, C) f32    running spatial sum of vlad
        s = pl.program_id(0)

        @pl.when(s == 0)
        def _init():
            acc_ref[...] = jnp.zeros_like(acc_ref)

        # Accumulate the spatial sum per batch row (static unroll over batch).
        # (B, hw_t, C) chunk -> B sublane reduces of (hw_t, C) -> (1, C) each.
        for b in range(batch):
            acc_ref[pl.ds(b, 1), :] += jnp.sum(v_ref[b], axis=0, keepdims=True)

        @pl.when(s == pl.num_programs(0) - 1)
        def _finalize():
            # fg = F.normalize(fg, p=2, dim=1)   (rsqrt -> EUP slot)
            fg = fg_ref[...]                                     # (B, C)
            ss = jnp.sum(fg * fg, axis=-1, keepdims=True)        # (B, 1)
            fgn = fg * jax.lax.rsqrt(jnp.maximum(ss, L2_EPS * L2_EPS))

            # fo = mean_hw(vlad - fg fg^T vlad) == m - fgn * (fgn . m)
            m = acc_ref[...] * inv_hw                            # (B, C)
            coef = jnp.sum(fgn * m, axis=-1, keepdims=True)      # (B, 1)
            fo = m - fgn * coef                                  # (B, C)

            # fc(concat(fgn, fo)) + eval-mode BN, with BN folded into w/b.
            y = (jnp.dot(fgn, wg_ref[...], preferred_element_type=jnp.float32)
                 + jnp.dot(fo, wo_ref[...], preferred_element_type=jnp.float32)
                 + b_ref[...])
            o_ref[...] = y.astype(o_ref.dtype)

    return kernel


@jax.jit
def orthogonal_forward(fg, vlad, params):
    B, C = fg.shape
    _, _, H, W = vlad.shape
    HW = H * W

    # Channel-last spatial map so C sits on the lane axis throughout the kernel.
    vlad_hwc = jnp.transpose(vlad, (0, 2, 3, 1)).reshape(B, HW, C)

    # Fold eval-mode BatchNorm1d into the Linear weights / bias.
    scale = params["gamma"] * jax.lax.rsqrt(params["running_var"] + BN_EPS)   # (1, C)
    w_f = params["w"] * scale                                                 # (2C, C)
    b_f = (params["b"] - params["running_mean"]) * scale + params["beta"]     # (1, C)
    w_fg = w_f[:C]
    w_fo = w_f[C:]

    hw_t = _pick_hw_tile(HW, B, C)
    grid = (HW // hw_t,)

    kernel = _make_fused_kernel(B, HW)

    out = pl.pallas_call(
        kernel,
        out_shape=jax.ShapeDtypeStruct((B, C), jnp.float32),
        grid_spec=pltpu.PrefetchScalarGridSpec(
            num_scalar_prefetch=0,
            grid=grid,
            in_specs=[
                pl.BlockSpec((B, C), lambda s: (0, 0)),           # fg (resident)
                pl.BlockSpec((B, hw_t, C), lambda s: (0, s, 0)),  # vlad chunk
                pl.BlockSpec((C, C), lambda s: (0, 0)),           # w_fg (resident)
                pl.BlockSpec((C, C), lambda s: (0, 0)),           # w_fo (resident)
                pl.BlockSpec((1, C), lambda s: (0, 0)),           # folded bias
            ],
            out_specs=pl.BlockSpec((B, C), lambda s: (0, 0)),     # lane-dense output
            scratch_shapes=[pltpu.VMEM((B, C), jnp.float32)],     # spatial-sum accumulator
        ),
        compiler_params=pltpu.CompilerParams(
            # single grid axis is a reduction (accumulator + resident output)
            dimension_semantics=("arbitrary",),
        ),
    )(fg, vlad_hwc, w_fg, w_fo, b_f)
    return out


def _ref_forward(fg, vlad, params):
    """Pure-JAX reference mirroring the PyTorch forward (eval-mode BN)."""
    B, C = fg.shape
    nrm = jnp.sqrt(jnp.sum(fg * fg, axis=1, keepdims=True))
    fgn = fg / jnp.maximum(nrm, L2_EPS)
    vflat = vlad.reshape(B, C, -1)
    s = jnp.einsum('bc,bch->bh', fgn, vflat)
    proj = fgn[:, :, None] * s[:, None, :]
    orth = vflat - proj
    fo = jnp.mean(orth, axis=2)
    feat = jnp.concatenate([fgn, fo], axis=1)
    y = feat @ params["w"] + params["b"][0]
    y = (y - params["running_mean"][0]) / jnp.sqrt(params["running_var"][0] + BN_EPS)
    return y * params["gamma"][0] + params["beta"][0]


if __name__ == "__main__":
    B, C, H, W = 2, REDUCTION_DIM, 16, 16

    key = jax.random.PRNGKey(0)
    ks = jax.random.split(key, 8)
    fg = jax.random.normal(ks[0], (B, C), jnp.float32)
    vlad = jax.random.normal(ks[1], (B, C, H, W), jnp.float32)

    # Deterministic synthetic parameters (fc: Linear(2C, C); bn: BatchNorm1d(C)).
    params = {
        "w": jax.random.normal(ks[2], (2 * C, C), jnp.float32) * 0.02,   # fc.weight.T
        "b": jax.random.normal(ks[3], (1, C), jnp.float32) * 0.01,       # fc.bias
        "gamma": 1.0 + 0.1 * jax.random.normal(ks[4], (1, C), jnp.float32),
        "beta": 0.1 * jax.random.normal(ks[5], (1, C), jnp.float32),
        "running_mean": 0.1 * jax.random.normal(ks[6], (1, C), jnp.float32),
        "running_var": 1.0 + 0.1 * jnp.abs(jax.random.normal(ks[7], (1, C), jnp.float32)),
    }

    out = orthogonal_forward(fg, vlad, params)
    jax.block_until_ready(out)

    ref = _ref_forward(fg, vlad, params)
    assert out.shape == (B, C) and out.dtype == jnp.float32
    # Tolerance covers MXU default-f32 matmul passes plus the (exact-in-real-
    # arithmetic) BN folding / fo-rewrite reassociation.
    assert jnp.allclose(out, ref, atol=5e-4, rtol=5e-4), "mismatch vs JAX reference"

    # TODO(synk): training-mode BatchNorm1d (batch statistics + running-stat
    # updates) is not modeled; inference/running-stat semantics only.
    print("KERNEL_OK")
</pallas_src>

<mosaic_0001>
module attributes {stable_mosaic.version = 11 : i64} {
  func.func @kernel(%arg0: i32, %arg1: memref<2x128xf32, #tpu.memory_space<vmem>>, %arg2: memref<2x256x128xf32, #tpu.memory_space<vmem>>, %arg3: memref<128x128xf32, #tpu.memory_space<vmem>>, %arg4: memref<128x128xf32, #tpu.memory_space<vmem>>, %arg5: memref<1x128xf32, #tpu.memory_space<vmem>>, %arg6: memref<2x128xf32, #tpu.memory_space<vmem>>, %arg7: memref<2x128xf32, #tpu.memory_space<vmem>>) attributes {dimension_semantics = [#tpu.dimension_semantics<arbitrary>], iteration_bounds = array<i64: 1>, scalar_prefetch = 0 : i64, scratch_operands = 1 : i64, tpu.core_type = #tpu.core_type<tc>, window_params = [{pipeline_mode = #tpu.pipeline_mode<synchronous>, transform_indices = @transform_0, window_bounds = array<i64: 2, 128>}, {transform_indices = @transform_1, window_bounds = array<i64: 2, 256, 128>}, {pipeline_mode = #tpu.pipeline_mode<synchronous>, transform_indices = @transform_2, window_bounds = array<i64: 128, 128>}, {pipeline_mode = #tpu.pipeline_mode<synchronous>, transform_indices = @transform_3, window_bounds = array<i64: 128, 128>}, {pipeline_mode = #tpu.pipeline_mode<synchronous>, transform_indices = @transform_4, window_bounds = array<i64: 1, 128>}, {pipeline_mode = #tpu.pipeline_mode<synchronous>, transform_indices = @transform_5, window_bounds = array<i64: 2, 128>}]} {
    %c0_i32 = arith.constant 0 : i32
    %0 = arith.cmpi eq, %arg0, %c0_i32 : i32
    %1 = arith.extui %0 : i1 to i32
    %c0_i32_0 = arith.constant 0 : i32
    %2 = arith.cmpi ne, %1, %c0_i32_0 : i32
    scf.if %2 {
      %cst_16 = arith.constant 0.000000e+00 : f32
      %20 = vector.broadcast %cst_16 : f32 to vector<2x128xf32>
      %c0_17 = arith.constant 0 : index
      %c0_18 = arith.constant 0 : index
      %21 = vector.load %arg7[%c0_17, %c0_18] : memref<2x128xf32, #tpu.memory_space<vmem>>, vector<2x128xf32>
      tpu.vector_store %arg7[%c0_17, %c0_18], %20 {strides = array<i32>} : memref<2x128xf32, #tpu.memory_space<vmem>>, vector<2x128xf32>,
    } else {
    }
    %c0 = arith.constant 0 : index
    %c0_1 = arith.constant 0 : index
    %3 = vector.load %arg7[%c0, %c0_1] : memref<2x128xf32, #tpu.memory_space<vmem>>, vector<1x128xf32>
    %c0_2 = arith.constant 0 : index
    %c0_3 = arith.constant 0 : index
    %c0_4 = arith.constant 0 : index
    %4 = vector.load %arg2[%c0_2, %c0_3, %c0_4] : memref<2x256x128xf32, #tpu.memory_space<vmem>>, vector<1x256x128xf32>
    %5 = vector.shape_cast %4 : vector<1x256x128xf32> to vector<256x128xf32>
    %cst = arith.constant dense<0.000000e+00> : vector<128xf32>
    %6 = vector.multi_reduction <add>, %5, %cst [0] : vector<256x128xf32> to vector<128xf32>
    %7 = vector.shape_cast %6 : vector<128xf32> to vector<1x128xf32>
    %8 = arith.addf %3, %7 : vector<1x128xf32>
    %c0_5 = arith.constant 0 : index
    %c0_6 = arith.constant 0 : index
    %9 = vector.load %arg7[%c0_5, %c0_6] : memref<2x128xf32, #tpu.memory_space<vmem>>, vector<1x128xf32>
    tpu.vector_store %arg7[%c0_5, %c0_6], %8 {strides = array<i32>} : memref<2x128xf32, #tpu.memory_space<vmem>>, vector<1x128xf32>,
    %c1 = arith.constant 1 : index
    %c0_7 = arith.constant 0 : index
    %10 = vector.load %arg7[%c1, %c0_7] : memref<2x128xf32, #tpu.memory_space<vmem>>, vector<1x128xf32>
    %c1_8 = arith.constant 1 : index
    %c0_9 = arith.constant 0 : index
    %c0_10 = arith.constant 0 : index
    %11 = vector.load %arg2[%c1_8, %c0_9, %c0_10] : memref<2x256x128xf32, #tpu.memory_space<vmem>>, vector<1x256x128xf32>
    %12 = vector.shape_cast %11 : vector<1x256x128xf32> to vector<256x128xf32>
    %cst_11 = arith.constant dense<0.000000e+00> : vector<128xf32>
    %13 = vector.multi_reduction <add>, %12, %cst_11 [0] : vector<256x128xf32> to vector<128xf32>
    %14 = vector.shape_cast %13 : vector<128xf32> to vector<1x128xf32>
    %15 = arith.addf %10, %14 : vector<1x128xf32>
    %c1_12 = arith.constant 1 : index
    %c0_13 = arith.constant 0 : index
    %16 = vector.load %arg7[%c1_12, %c0_13] : memref<2x128xf32, #tpu.memory_space<vmem>>, vector<1x128xf32>
    tpu.vector_store %arg7[%c1_12, %c0_13], %15 {strides = array<i32>} : memref<2x128xf32, #tpu.memory_space<vmem>>, vector<1x128xf32>,
    %c0_i32_14 = arith.constant 0 : i32
    %17 = arith.cmpi eq, %arg0, %c0_i32_14 : i32
    %18 = arith.extui %17 : i1 to i32
    %c0_i32_15 = arith.constant 0 : i32
    %19 = arith.cmpi ne, %18, %c0_i32_15 : i32
    scf.if %19 {
      %c0_16 = arith.constant 0 : index
      %c0_17 = arith.constant 0 : index
      %20 = vector.load %arg1[%c0_16, %c0_17] : memref<2x128xf32, #tpu.memory_space<vmem>>, vector<2x128xf32>
      %21 = arith.mulf %20, %20 : vector<2x128xf32>
      %cst_18 = arith.constant dense<0.000000e+00> : vector<2xf32>
      %22 = vector.multi_reduction <add>, %21, %cst_18 [1] : vector<2x128xf32> to vector<2xf32>
      %23 = vector.shape_cast %22 : vector<2xf32> to vector<2x1xf32>
      %cst_19 = arith.constant 1.000000e-24 : f32
      %24 = vector.broadcast %cst_19 : f32 to vector<2x1xf32>
      %25 = arith.maximumf %23, %24 : vector<2x1xf32>
      %26 = math.rsqrt %25 : vector<2x1xf32>
      %27 = vector.broadcast %26 : vector<2x1xf32> to vector<2x128xf32>
      %28 = arith.mulf %20, %27 : vector<2x128xf32>
      %c0_20 = arith.constant 0 : index
      %c0_21 = arith.constant 0 : index
      %29 = vector.load %arg7[%c0_20, %c0_21] : memref<2x128xf32, #tpu.memory_space<vmem>>, vector<2x128xf32>
      %cst_22 = arith.constant 3.906250e-03 : f32
      %30 = vector.broadcast %cst_22 : f32 to vector<2x128xf32>
      %31 = arith.mulf %29, %30 : vector<2x128xf32>
      %32 = arith.mulf %28, %31 : vector<2x128xf32>
      %cst_23 = arith.constant dense<0.000000e+00> : vector<2xf32>
      %33 = vector.multi_reduction <add>, %32, %cst_23 [1] : vector<2x128xf32> to vector<2xf32>
      %34 = vector.shape_cast %33 : vector<2xf32> to vector<2x1xf32>
      %35 = vector.broadcast %34 : vector<2x1xf32> to vector<2x128xf32>
      %36 = arith.mulf %28, %35 : vector<2x128xf32>
      %37 = arith.subf %31, %36 : vector<2x128xf32>
      %c0_24 = arith.constant 0 : index
      %c0_25 = arith.constant 0 : index
      %38 = vector.load %arg3[%c0_24, %c0_25] : memref<128x128xf32, #tpu.memory_space<vmem>>, vector<128x128xf32>
      %cst_26 = arith.constant dense<0.000000e+00> : vector<2x128xf32>
      %39 = tpu.matmul %28, %38, %cst_26 {dimension_numbers = #tpu.dot_dimension_numbers<[1], [0], [0], [1], [0, 0, 1, 1], [], []>} : vector<2x128xf32>, vector<128x128xf32>, vector<2x128xf32> -> vector<2x128xf32>
      %c0_27 = arith.constant 0 : index
      %c0_28 = arith.constant 0 : index
      %40 = vector.load %arg4[%c0_27, %c0_28] : memref<128x128xf32, #tpu.memory_space<vmem>>, vector<128x128xf32>
      %cst_29 = arith.constant dense<0.000000e+00> : vector<2x128xf32>
      %41 = tpu.matmul %37, %40, %cst_29 {dimension_numbers = #tpu.dot_dimension_numbers<[1], [0], [0], [1], [0, 0, 1, 1], [], []>} : vector<2x128xf32>, vector<128x128xf32>, vector<2x128xf32> -> vector<2x128xf32>
      %42 = arith.addf %39, %41 : vector<2x128xf32>
      %c0_30 = arith.constant 0 : index
      %c0_31 = arith.constant 0 : index
      %43 = vector.load %arg5[%c0_30, %c0_31] : memref<1x128xf32, #tpu.memory_space<vmem>>, vector<1x128xf32>
      %44 = vector.broadcast %43 : vector<1x128xf32> to vector<2x128xf32>
      %45 = arith.addf %42, %44 : vector<2x128xf32>
      %c0_32 = arith.constant 0 : index
      %c0_33 = arith.constant 0 : index
      %46 = vector.load %arg6[%c0_32, %c0_33] : memref<2x128xf32, #tpu.memory_space<vmem>>, vector<2x128xf32>
      tpu.vector_store %arg6[%c0_32, %c0_33], %45 {strides = array<i32>} : memref<2x128xf32, #tpu.memory_space<vmem>>, vector<2x128xf32>,
    } else {
    }
    return
  }
  func.func @transform_0(%arg0: i32) -> (i32, i32) {
    %c0_i32 = arith.constant 0 : i32
    %c0_i32_0 = arith.constant 0 : i32
    %c0_i32_1 = arith.constant 0 : i32
    return %c0_i32, %c0_i32_0 : i32, i32
  }
  func.func @transform_1(%arg0: i32) -> (i32, i32, i32) {
    %c0_i32 = arith.constant 0 : i32
    %c0_i32_0 = arith.constant 0 : i32
    %c0_i32_1 = arith.constant 0 : i32
    return %c0_i32, %arg0, %c0_i32_0 : i32, i32, i32
  }
  func.func @transform_2(%arg0: i32) -> (i32, i32) {
    %c0_i32 = arith.constant 0 : i32
    %c0_i32_0 = arith.constant 0 : i32
    %c0_i32_1 = arith.constant 0 : i32
    return %c0_i32, %c0_i32_0 : i32, i32
  }
  func.func @transform_3(%arg0: i32) -> (i32, i32) {
    %c0_i32 = arith.constant 0 : i32
    %c0_i32_0 = arith.constant 0 : i32
    %c0_i32_1 = arith.constant 0 : i32
    return %c0_i32, %c0_i32_0 : i32, i32
  }
  func.func @transform_4(%arg0: i32) -> (i32, i32) {
    %c0_i32 = arith.constant 0 : i32
    %c0_i32_0 = arith.constant 0 : i32
    %c0_i32_1 = arith.constant 0 : i32
    return %c0_i32, %c0_i32_0 : i32, i32
  }
  func.func @transform_5(%arg0: i32) -> (i32, i32) {
    %c0_i32 = arith.constant 0 : i32
    %c0_i32_0 = arith.constant 0 : i32
    %c0_i32_1 = arith.constant 0 : i32
    return %c0_i32, %c0_i32_0 : i32, i32
  }
}

</mosaic_0001>

<llo_original>
// kernel: orthogonal_forward.1
$region0: #{orthogonal_forward.1}
  #allocation0 [shape = 'u32[]', space=smem, size = 0x4, offset = 0x4, fixed_abs, tag = 'smem constant byte address 0x4 - core index']
  #allocation1 [shape = 'u32[144,128]{1,0:T(1,128)}', space=vmem, size = 0x12000, scoped, tag = 'internal scratch']
  #allocation2 [shape = 'f32[2,128]{1,0:T(2,128)}', space=vmem, size = 0x400, scoped, tag = 'scratch operand']
  %s0 = inlined_call_operand.vmem [shape: f32[2,128], index: 0, kind: input, shape index: {}]
  %s1 = inlined_call_operand.vmem [shape: f32[2,256,128], index: 1, kind: input, shape index: {}]
  %s2 = inlined_call_operand.vmem [shape: f32[128,128], index: 2, kind: input, shape index: {}]
  %s3 = inlined_call_operand.vmem [shape: f32[128,128], index: 3, kind: input, shape index: {}]
  %s4 = inlined_call_operand.vmem [shape: f32[1,128], index: 4, kind: input, shape index: {}]
  %s5 = inlined_call_operand.hbm [shape: f32[2,128], index: 5, kind: output, shape index: {}]
  %s6 = sld [smem:[#allocation0]]
  $region38: #{orthogonal_forward.1} parent=0
    _
  %s8 = ssub.s32 1, %s6
  %s9 = scalar_select 0, %s8, %s6
  $region1: #{orthogonal_forward.1} parent=0
    #allocation3 [shape = 'u8[1024]{0}', space=vmem, size = 0x400, scoped, tag = 'output window, operand 0, single buffered']
    #allocation4 [shape = 's32[1]{0}', space=sflag, size = 0x4, scoped, tag = 'scoped memory for orthogonal_forward.1']
    %10 = vsyncpa [#allocation4], 0
    // Predicated region
    $region2: #{orthogonal_forward.1} parent=1 // pred_check
      _
    $region3: #{orthogonal_forward.1} parent=1 // pred_check_branch
      %12 = sbr.rel (0) target = $region5
    $region4: #{orthogonal_forward.1} parent=1 // pred_region
      _
    $region5: #{orthogonal_forward.1} parent=1 // pred_fallthru
      _
    // Predicated region
    $region6: #{orthogonal_forward.1} parent=1 // pred_check
      _
    $region7: #{orthogonal_forward.1} parent=1 // pred_check_branch
      %14 = sbr.rel (0) target = $region9
    $region8: #{orthogonal_forward.1} parent=1 // pred_region
      _
    $region9: #{orthogonal_forward.1} parent=1 // pred_fallthru
      _
    // Predicated region
    $region10: #{orthogonal_forward.1} parent=1 // pred_check
      _
    $region11: #{orthogonal_forward.1} parent=1 // pred_check_branch
      %16 = sbr.rel (0) target = $region13
    $region12: #{orthogonal_forward.1} parent=1 // pred_region
      _
    $region13: #{orthogonal_forward.1} parent=1 // pred_fallthru
      _
    // Predicated region
    $region14: #{orthogonal_forward.1} parent=1 // pred_check
      _
    $region15: #{orthogonal_forward.1} parent=1 // pred_check_branch
      %18 = sbr.rel (0) target = $region17
    $region16: #{orthogonal_forward.1} parent=1 // pred_region
      _
    $region17: #{orthogonal_forward.1} parent=1 // pred_fallthru
      _
    // Predicated region
    $region18: #{orthogonal_forward.1} parent=1 // pred_check
      _
    $region19: #{orthogonal_forward.1} parent=1 // pred_check_branch
      %20 = sbr.rel (0) target = $region21
    $region20: #{orthogonal_forward.1} parent=1 // pred_region
      _
    $region21: #{orthogonal_forward.1} parent=1 // pred_fallthru
      _
    %p21 = scmp.eq.s32.totalorder 0, 0
    // Predicated region
    $region22: #{orthogonal_forward.1} parent=1 // pred_check
      %p22 = pneg %p21
    $region23: #{orthogonal_forward.1} parent=1 // pred_check_branch
      %24 = sbr.rel (%p22) target = $region25
    $region24: #{orthogonal_forward.1} parent=1 // pred_region
      %25 = vst [vmem:[#allocation2] sm:$0x3] 0.0
    $region25: #{orthogonal_forward.1} parent=1 // pred_fallthru
      _
    %v26 = vld [vmem:[#allocation2] sm:$0x1]
    %v27 = vld [vmem:[%s1] sm:$0xff]
    %v28 = vld [vmem:[%s1 + $0x8] sm:$0xff]
    %v29 = vld [vmem:[%s1 + $0x10] sm:$0xff]
    %v30 = vld [vmem:[%s1 + $0x18] sm:$0xff]
    %v31 = vld [vmem:[%s1 + $0x20] sm:$0xff]
    %v32 = vld [vmem:[%s1 + $0x28] sm:$0xff]
    %v33 = vld [vmem:[%s1 + $0x30] sm:$0xff]
    %v34 = vld [vmem:[%s1 + $0x38] sm:$0xff]
    %v35 = vld [vmem:[%s1 + $0x40] sm:$0xff]
    %v36 = vld [vmem:[%s1 + $0x48] sm:$0xff]
    %v37 = vld [vmem:[%s1 + $0x50] sm:$0xff]
    %v38 = vld [vmem:[%s1 + $0x58] sm:$0xff]
    %v39 = vld [vmem:[%s1 + $0x60] sm:$0xff]
    %v40 = vld [vmem:[%s1 + $0x68] sm:$0xff]
    %v41 = vld [vmem:[%s1 + $0x70] sm:$0xff]
    %v42 = vld [vmem:[%s1 + $0x78] sm:$0xff]
    %v43 = vld [vmem:[%s1 + $0x80] sm:$0xff]
    %v44 = vld [vmem:[%s1 + $0x88] sm:$0xff]
    %v45 = vld [vmem:[%s1 + $0x90] sm:$0xff]
    %v46 = vld [vmem:[%s1 + $0x98] sm:$0xff]
    %v47 = vld [vmem:[%s1 + $0xa0] sm:$0xff]
    %v48 = vld [vmem:[%s1 + $0xa8] sm:$0xff]
    %v49 = vld [vmem:[%s1 + $0xb0] sm:$0xff]
    %v50 = vld [vmem:[%s1 + $0xb8] sm:$0xff]
    %v51 = vld [vmem:[%s1 + $0xc0] sm:$0xff]
    %v52 = vld [vmem:[%s1 + $0xc8] sm:$0xff]
    %v53 = vld [vmem:[%s1 + $0xd0] sm:$0xff]
    %v54 = vld [vmem:[%s1 + $0xd8] sm:$0xff]
    %v55 = vld [vmem:[%s1 + $0xe0] sm:$0xff]
    %v56 = vld [vmem:[%s1 + $0xe8] sm:$0xff]
    %v57 = vld [vmem:[%s1 + $0xf0] sm:$0xff]
    %v58 = vld [vmem:[%s1 + $0xf8] sm:$0xff]
    %v59 = vadd.f32 %v27, %v28
    %v60 = vadd.f32 %v59, %v29
    %v61 = vadd.f32 %v60, %v30
    %v62 = vadd.f32 %v61, %v31
    %v63 = vadd.f32 %v62, %v32
    %v64 = vadd.f32 %v63, %v33
    %v65 = vadd.f32 %v64, %v34
    %v66 = vadd.f32 %v65, %v35
    %v67 = vadd.f32 %v66, %v36
    %v68 = vadd.f32 %v67, %v37
    %v69 = vadd.f32 %v68, %v38
    %v70 = vadd.f32 %v69, %v39
    %v71 = vadd.f32 %v70, %v40
    %v72 = vadd.f32 %v71, %v41
    %v73 = vadd.f32 %v72, %v42
    %v74 = vadd.f32 %v73, %v43
    %v75 = vadd.f32 %v74, %v44
    %v76 = vadd.f32 %v75, %v45
    %v77 = vadd.f32 %v76, %v46
    %v78 = vadd.f32 %v77, %v47
    %v79 = vadd.f32 %v78, %v48
    %v80 = vadd.f32 %v79, %v49
    %v81 = vadd.f32 %v80, %v50
    %v82 = vadd.f32 %v81, %v51
    %v83 = vadd.f32 %v82, %v52
    %v84 = vadd.f32 %v83, %v53
    %v85 = vadd.f32 %v84, %v54
    %v86 = vadd.f32 %v85, %v55
    %v87 = vadd.f32 %v86, %v56
    %v88 = vadd.f32 %v87, %v57
    %v89 = vadd.f32 %v88, %v58
    %v90 = vrot.slane %v89, 4
    %v91 = vadd.f32 %v89, %v90
    %v92 = vrot.slane %v91, 2
    %v93 = vadd.f32 %v91, %v92
    %v94 = vrot.slane %v93, 1
    %v95 = vadd.f32 %v93, %v94
    %v96 = vadd.f32 %v26, %v95
    %97 = vst [vmem:[#allocation2] sm:$0x1] %v96
    %v98 = vld [vmem:[#allocation2 + $0x1] sm:$0x1]
    %s99 = scalar_lea.vmem %s1, 256
    %v100 = vld [vmem:[%s99] sm:$0xff]
    %v101 = vld [vmem:[%s99 + $0x8] sm:$0xff]
    %v102 = vld [vmem:[%s99 + $0x10] sm:$0xff]
    %v103 = vld [vmem:[%s99 + $0x18] sm:$0xff]
    %v104 = vld [vmem:[%s99 + $0x20] sm:$0xff]
    %v105 = vld [vmem:[%s99 + $0x28] sm:$0xff]
    %v106 = vld [vmem:[%s99 + $0x30] sm:$0xff]
    %v107 = vld [vmem:[%s99 + $0x38] sm:$0xff]
    %v108 = vld [vmem:[%s99 + $0x40] sm:$0xff]
    %v109 = vld [vmem:[%s99 + $0x48] sm:$0xff]
    %v110 = vld [vmem:[%s99 + $0x50] sm:$0xff]
    %v111 = vld [vmem:[%s99 + $0x58] sm:$0xff]
    %v112 = vld [vmem:[%s99 + $0x60] sm:$0xff]
    %v113 = vld [vmem:[%s99 + $0x68] sm:$0xff]
    %v114 = vld [vmem:[%s99 + $0x70] sm:$0xff]
    %v115 = vld [vmem:[%s99 + $0x78] sm:$0xff]
    %v116 = vld [vmem:[%s99 + $0x80] sm:$0xff]
    %v117 = vld [vmem:[%s99 + $0x88] sm:$0xff]
    %v118 = vld [vmem:[%s99 + $0x90] sm:$0xff]
    %v119 = vld [vmem:[%s99 + $0x98] sm:$0xff]
    %v120 = vld [vmem:[%s99 + $0xa0] sm:$0xff]
    %v121 = vld [vmem:[%s99 + $0xa8] sm:$0xff]
    %v122 = vld [vmem:[%s99 + $0xb0] sm:$0xff]
    %v123 = vld [vmem:[%s99 + $0xb8] sm:$0xff]
    %v124 = vld [vmem:[%s99 + $0xc0] sm:$0xff]
    %v125 = vld [vmem:[%s99 + $0xc8] sm:$0xff]
    %v126 = vld [vmem:[%s99 + $0xd0] sm:$0xff]
    %v127 = vld [vmem:[%s99 + $0xd8] sm:$0xff]
    %v128 = vld [vmem:[%s99 + $0xe0] sm:$0xff]
    %v129 = vld [vmem:[%s99 + $0xe8] sm:$0xff]
    %v130 = vld [vmem:[%s99 + $0xf0] sm:$0xff]
    %v131 = vld [vmem:[%s99 + $0xf8] sm:$0xff]
    %v132 = vadd.f32 %v100, %v101
    %v133 = vadd.f32 %v132, %v102
    %v134 = vadd.f32 %v133, %v103
    %v135 = vadd.f32 %v134, %v104
    %v136 = vadd.f32 %v135, %v105
    %v137 = vadd.f32 %v136, %v106
    %v138 = vadd.f32 %v137, %v107
    %v139 = vadd.f32 %v138, %v108
    %v140 = vadd.f32 %v139, %v109
    %v141 = vadd.f32 %v140, %v110
    %v142 = vadd.f32 %v141, %v111
    %v143 = vadd.f32 %v142, %v112
    %v144 = vadd.f32 %v143, %v113
    %v145 = vadd.f32 %v144, %v114
    %v146 = vadd.f32 %v145, %v115
    %v147 = vadd.f32 %v146, %v116
    %v148 = vadd.f32 %v147, %v117
    %v149 = vadd.f32 %v148, %v118
    %v150 = vadd.f32 %v149, %v119
    %v151 = vadd.f32 %v150, %v120
    %v152 = vadd.f32 %v151, %v121
    %v153 = vadd.f32 %v152, %v122
    %v154 = vadd.f32 %v153, %v123
    %v155 = vadd.f32 %v154, %v124
    %v156 = vadd.f32 %v155, %v125
    %v157 = vadd.f32 %v156, %v126
    %v158 = vadd.f32 %v157, %v127
    %v159 = vadd.f32 %v158, %v128
    %v160 = vadd.f32 %v159, %v129
    %v161 = vadd.f32 %v160, %v130
    %v162 = vadd.f32 %v161, %v131
    %v163 = vrot.slane %v162, 4
    %v164 = vadd.f32 %v162, %v163
    %v165 = vrot.slane %v164, 2
    %v166 = vadd.f32 %v164, %v165
    %v167 = vrot.slane %v166, 1
    %v168 = vadd.f32 %v166, %v167
    %v169 = vadd.f32 %v98, %v168
    %170 = vst [vmem:[#allocation2 + $0x1] sm:$0x1] %v169
    // Predicated region
    $region26: #{orthogonal_forward.1} parent=1 // pred_check
      %p171 = pneg %p21
    $region27: #{orthogonal_forward.1} parent=1 // pred_check_branch
      %173 = sbr.rel (%p171) target = $region29
    $region28: #{orthogonal_forward.1} parent=1 // pred_region
      %v174 = vld [vmem:[%s0] sm:$0x3]
      %v175 = vmul.f32 %v174, %v174
      %vm176 = vcmask 1041408
      %v177 = vsel %vm176, %v175, 0.0
      %178 = vadd.xlane.f32.xlu0 %v177
      %v179 = vpop.xlane.xlu0 %178
      %v180 = vmax.f32 %v179, 1e-24
      %v181 = vrsqrt.pop %v180
      %v182 = vmul.f32 %v174, %v181
      %v183 = vld [vmem:[#allocation2] sm:$0x3]
      %v184 = vmul.f32 %v183, 0.00390625
      %v185 = vmul.f32 %v182, %v184
      %v186 = vsel %vm176, %v185, 0.0
      %187 = vadd.xlane.f32.xlu0 %v186
      %v188 = vpop.xlane.xlu0 %187
      %v189 = vmul.f32 %v182, %v188
      %v190 = vsub.f32 %v184, %v189
      %v191 = vld [vmem:[%s2] sm:$0xff]
      %v192 = vld [vmem:[%s2 + $0x8] sm:$0xff]
      %v193 = vld [vmem:[%s2 + $0x10] sm:$0xff]
      %v194 = vld [vmem:[%s2 + $0x18] sm:$0xff]
      %v195 = vld [vmem:[%s2 + $0x20] sm:$0xff]
      %v196 = vld [vmem:[%s2 + $0x28] sm:$0xff]
      %v197 = vld [vmem:[%s2 + $0x30] sm:$0xff]
      %v198 = vld [vmem:[%s2 + $0x38] sm:$0xff]
      %v199 = vld [vmem:[%s2 + $0x40] sm:$0xff]
      %v200 = vld [vmem:[%s2 + $0x48] sm:$0xff]
      %v201 = vld [vmem:[%s2 + $0x50] sm:$0xff]
      %v202 = vld [vmem:[%s2 + $0x58] sm:$0xff]
      %v203 = vld [vmem:[%s2 + $0x60] sm:$0xff]
      %v204 = vld [vmem:[%s2 + $0x68] sm:$0xff]
      %v205 = vld [vmem:[%s2 + $0x70] sm:$0xff]
      %v206 = vld [vmem:[%s2 + $0x78] sm:$0xff]
      %v207 = vld [vmem:[%s3] sm:$0xff]
      %v208 = vld [vmem:[%s3 + $0x8] sm:$0xff]
      %v209 = vld [vmem:[%s3 + $0x10] sm:$0xff]
      %v210 = vld [vmem:[%s3 + $0x18] sm:$0xff]
      %v211 = vld [vmem:[%s3 + $0x20] sm:$0xff]
      %v212 = vld [vmem:[%s3 + $0x28] sm:$0xff]
      %v213 = vld [vmem:[%s3 + $0x30] sm:$0xff]
      %v214 = vld [vmem:[%s3 + $0x38] sm:$0xff]
      %v215 = vld [vmem:[%s3 + $0x40] sm:$0xff]
      %v216 = vld [vmem:[%s3 + $0x48] sm:$0xff]
      %v217 = vld [vmem:[%s3 + $0x50] sm:$0xff]
      %v218 = vld [vmem:[%s3 + $0x58] sm:$0xff]
      %v219 = vld [vmem:[%s3 + $0x60] sm:$0xff]
      %v220 = vld [vmem:[%s3 + $0x68] sm:$0xff]
      %v221 = vld [vmem:[%s3 + $0x70] sm:$0xff]
      %v222 = vld [vmem:[%s3 + $0x78] sm:$0xff]
      %223 = vmatprep.subr.mxu0 0.0
      %224 = vmatpush1.msra.mxu0 %v207
      %225 = vmatprep.subr.mxu0 0.0
      %226 = vmatpush1.msra.mxu0 %v208
      %227 = vmatprep.subr.mxu0 0.0
      %228 = vmatpush1.msra.mxu0 %v209
      %229 = vmatprep.subr.mxu0 0.0
      %230 = vmatpush1.msra.mxu0 %v210
      %231 = vmatprep.subr.mxu0 0.0
      %232 = vmatpush1.msra.mxu0 %v211
      %233 = vmatprep.subr.mxu0 0.0
      %234 = vmatpush1.msra.mxu0 %v212
      %235 = vmatprep.subr.mxu0 0.0
      %236 = vmatpush1.msra.mxu0 %v213
      %237 = vmatprep.subr.mxu0 0.0
      %238 = vmatpush1.msra.mxu0 %v214
      %239 = vmatprep.subr.mxu0 0.0
      %240 = vmatpush1.msra.mxu0 %v215
      %241 = vmatprep.subr.mxu0 0.0
      %242 = vmatpush1.msra.mxu0 %v216
      %243 = vmatprep.subr.mxu0 0.0
      %244 = vmatpush1.msra.mxu0 %v217
      %245 = vmatprep.subr.mxu0 0.0
      %246 = vmatpush1.msra.mxu0 %v218
      %247 = vmatprep.subr.mxu0 0.0
      %248 = vmatpush1.msra.mxu0 %v219
      %249 = vmatprep.subr.mxu0 0.0
      %250 = vmatpush1.msra.mxu0 %v220
      %251 = vmatprep.subr.mxu0 0.0
      %252 = vmatpush1.msra.mxu0 %v221
      %253 = vmatprep.subr.mxu0 0.0
      %254 = vmatpush1.msra.mxu0 %v222
      %255 = vmatprep.subr.mxu0 0.0
      %256 = vmatpush1.msra.mxu0 0.0
      %257 = vmatprep.subr.mxu0 0.0
      %258 = vmatpush1.msra.mxu0 0.0
      %259 = vmatprep.subr.mxu0 0.0
      %260 = vmatpush1.msra.mxu0 0.0
      %261 = vmatprep.subr.mxu0 0.0
      %262 = vmatpush1.msra.mxu0 0.0
      %263 = vmatprep.subr.mxu0 0.0
      %264 = vmatpush1.msra.mxu0 0.0
      %265 = vmatprep.subr.mxu0 0.0
      %266 = vmatpush1.msra.mxu0 0.0
      %267 = vmatprep.subr.mxu0 0.0
      %268 = vmatpush1.msra.mxu0 0.0
      %269 = vmatprep.subr.mxu0 0.0
      %270 = vmatpush1.msra.mxu0 0.0
      %271 = vmatprep.subr.mxu0 0.0
      %272 = vmatpush1.msra.mxu0 0.0
      %273 = vmatprep.subr.mxu0 0.0
      %274 = vmatpush1.msra.mxu0 0.0
      %275 = vmatprep.subr.mxu0 0.0
      %276 = vmatpush1.msra.mxu0 0.0
      %277 = vmatprep.subr.mxu0 0.0
      %278 = vmatpush1.msra.mxu0 0.0
      %279 = vmatprep.subr.mxu0 0.0
      %280 = vmatpush1.msra.mxu0 0.0
      %281 = vmatprep.subr.mxu0 0.0
      %282 = vmatpush1.msra.mxu0 0.0
      %283 = vmatprep.subr.mxu0 0.0
      %284 = vmatpush1.msra.mxu0 0.0
      %285 = vmatprep.subr.mxu0 0.0
      %286 = vmatpush1.msra.mxu0 0.0
      %287 = vmatprep.mubr.f32.mxu0 0.0
      %288 = vmatmul.mubr.f32.gmra.mrb[0].mxu0 %v190
      %v289 = vpop.f32.mrb[0].mxu0
      %v290 = vadd.f32 0.0, %v289
      %v291 = vpop.f32.mrb[0].mxu0
      %292 = vdwg.mxu0
      %293 = vmatprep.subr.mxu0 0.0
      %294 = vmatpush1.msra.mxu0 %v191
      %295 = vmatprep.subr.mxu0 0.0
      %296 = vmatpush1.msra.mxu0 %v192
      %297 = vmatprep.subr.mxu0 0.0
      %298 = vmatpush1.msra.mxu0 %v193
      %299 = vmatprep.subr.mxu0 0.0
      %300 = vmatpush1.msra.mxu0 %v194
      %301 = vmatprep.subr.mxu0 0.0
      %302 = vmatpush1.msra.mxu0 %v195
      %303 = vmatprep.subr.mxu0 0.0
      %304 = vmatpush1.msra.mxu0 %v196
      %305 = vmatprep.subr.mxu0 0.0
      %306 = vmatpush1.msra.mxu0 %v197
      %307 = vmatprep.subr.mxu0 0.0
      %308 = vmatpush1.msra.mxu0 %v198
      %309 = vmatprep.subr.mxu0 0.0
      %310 = vmatpush1.msra.mxu0 %v199
      %311 = vmatprep.subr.mxu0 0.0
      %312 = vmatpush1.msra.mxu0 %v200
      %313 = vmatprep.subr.mxu0 0.0
      %314 = vmatpush1.msra.mxu0 %v201
      %315 = vmatprep.subr.mxu0 0.0
      %316 = vmatpush1.msra.mxu0 %v202
      %317 = vmatprep.subr.mxu0 0.0
      %318 = vmatpush1.msra.mxu0 %v203
      %319 = vmatprep.subr.mxu0 0.0
      %320 = vmatpush1.msra.mxu0 %v204
      %321 = vmatprep.subr.mxu0 0.0
      %322 = vmatpush1.msra.mxu0 %v205
      %323 = vmatprep.subr.mxu0 0.0
      %324 = vmatpush1.msra.mxu0 %v206
      %325 = vmatprep.subr.mxu0 0.0
      %326 = vmatpush1.msra.mxu0 0.0
      %327 = vmatprep.subr.mxu0 0.0
      %328 = vmatpush1.msra.mxu0 0.0
      %329 = vmatprep.subr.mxu0 0.0
      %330 = vmatpush1.msra.mxu0 0.0
      %331 = vmatprep.subr.mxu0 0.0
      %332 = vmatpush1.msra.mxu0 0.0
      %333 = vmatprep.subr.mxu0 0.0
      %334 = vmatpush1.msra.mxu0 0.0
      %335 = vmatprep.subr.mxu0 0.0
      %336 = vmatpush1.msra.mxu0 0.0
      %337 = vmatprep.subr.mxu0 0.0
      %338 = vmatpush1.msra.mxu0 0.0
      %339 = vmatprep.subr.mxu0 0.0
      %340 = vmatpush1.msra.mxu0 0.0
      %341 = vmatprep.subr.mxu0 0.0
      %342 = vmatpush1.msra.mxu0 0.0
      %343 = vmatprep.subr.mxu0 0.0
      %344 = vmatpush1.msra.mxu0 0.0
      %345 = vmatprep.subr.mxu0 0.0
      %346 = vmatpush1.msra.mxu0 0.0
      %347 = vmatprep.subr.mxu0 0.0
      %348 = vmatpush1.msra.mxu0 0.0
      %349 = vmatprep.subr.mxu0 0.0
      %350 = vmatpush1.msra.mxu0 0.0
      %351 = vmatprep.subr.mxu0 0.0
      %352 = vmatpush1.msra.mxu0 0.0
      %353 = vmatprep.subr.mxu0 0.0
      %354 = vmatpush1.msra.mxu0 0.0
      %355 = vmatprep.subr.mxu0 0.0
      %356 = vmatpush1.msra.mxu0 0.0
      %357 = vmatprep.mubr.f32.mxu0 0.0
      %358 = vmatmul.mubr.f32.gmra.mrb[0].mxu0 %v182
      %v359 = vpop.f32.mrb[0].mxu0
      %v360 = vadd.f32 %v290, %v359
      %v361 = vpop.f32.mrb[0].mxu0
      %362 = vdwg.mxu0
      %v363 = vld [vmem:[%s4] sm:$0x1]
      %v365 = vlaneseq
      %v366 = vshrl.u32 %v365, 7
      %v367 = vsub.s32 0, %v366
      %v368 = vrot.slane %v363, %v367
      %v370 = vadd.f32 %v360, %v368
      %371 = vst [vmem:[#allocation3] sm:$0x3] %v370
    $region29: #{orthogonal_forward.1} parent=1 // pred_fallthru
      _
    // Predicated region
    $region30: #{orthogonal_forward.1} parent=1 // pred_check
      _
    $region31: #{orthogonal_forward.1} parent=1 // pred_check_branch
      %373 = sbr.rel (0) target = $region33
    $region32: #{orthogonal_forward.1} parent=1 // pred_region
      %s375 = ssub.s32 32, 32
      %376 = vsyncadd [#allocation4], %s375
      %s378 = sshll.u32 [#allocation3], 4
      %s379 = int_to_ptr.vmem [resolvable:$true] %s378
      %381 = dma.vmem_to_hbm [thread:$0]  %s379, 32, %s5, [#allocation4]
    $region33: #{orthogonal_forward.1} parent=1 // pred_fallthru
      _
    // Predicated region
    $region34: #{orthogonal_forward.1} parent=1 // pred_check
      _
    $region35: #{orthogonal_forward.1} parent=1 // pred_check_branch
      %383 = sbr.rel (0) target = $region37
    $region36: #{orthogonal_forward.1} parent=1 // pred_region
      %384 = dma.done [#allocation4], 32
    $region37: #{orthogonal_forward.1} parent=1 // pred_fallthru
      _
    %385 = vsyncpa [#allocation4], 1

</llo_original>
